<compile_context>
chip_gen: v7x
topology: tpu7x:2x2x1
jax: 0.10.0
libtpu: 0.0.40
codegen_flags: <defaults>
</compile_context>

<pallas_src>
import jax
import jax.numpy as jnp
from jax.experimental import pallas as pl
from jax.experimental.pallas import tpu as pltpu


def _round_up(a, b):
    return (a + b - 1) // b * b


def _conv1x1_kernel(x_ref, pad_ref, w_ref, b_ref, o_ref):
    # x_ref, pad_ref : (1, C, TM)   channels on sublanes, pixels on lanes
    # w_ref          : (C, O, 1)    per-input-channel weight column
    # b_ref          : (O, 1)
    # o_ref          : (1, O, TM)
    xs = (x_ref[0] + pad_ref[0]).astype(jnp.float32)            # (C, TM)
    c_in, tm = xs.shape
    o_ch = o_ref.shape[1]
    # Hoist the bias lane-broadcast out of the channel loop (no CSE of
    # broadcast_in_dim in JAX).
    out = jnp.broadcast_to(b_ref[...].astype(jnp.float32), (o_ch, tm))
    # (O,1) * (1,TM) broadcast FMAs on the VPU — no MXU, lane-dense stores.
    for c in range(c_in):                                       # static unroll (C=2)
        out = out + w_ref[c] * xs[c:c + 1, :]
    o_ref[0] = out.astype(o_ref.dtype)


def conv1x1_forward(x_nchw, pad_nchw, weight_oc, bias_o, *, max_tile_m=8192):
    """x_nchw, pad_nchw: (N, C, H, W); weight_oc: (O, C); bias_o: (O,)."""
    N, C, H, W = x_nchw.shape
    O = weight_oc.shape[0]
    M = H * W

    # Keep NCHW; pixels become the lane axis. No transposes over HBM.
    x = x_nchw.reshape(N, C, M)
    p = pad_nchw.reshape(N, C, M)

    # Pixel tile selection:
    #   * cover the whole pixel axis in as few steps as possible (the previous
    #     (1, 8) grid was overhead-bound), capped at max_tile_m lanes,
    #   * keep 2 pixel steps when batch alone can't feed both v7x TensorCores
    #     (negligible extra cost on the single-TC v5e/v6e).
    if M <= max_tile_m:
        if N < 2 and M >= 256 and M % 256 == 0:
            tm = M // 2          # two lane-dense steps -> both v7x TCs usable
        else:
            tm = M               # single full-pixel-axis step, no padding needed
    else:
        tm = max_tile_m          # 8192: multiple of 128, ~96 B/lane double-buffered

    Mp = _round_up(M, tm)
    if Mp != M:
        # TODO(synk): ragged last tile instead of padding; only reachable when
        # M > max_tile_m and not a multiple of it (never for the spec shape).
        x = jnp.pad(x, ((0, 0), (0, 0), (0, Mp - M)))
        p = jnp.pad(p, ((0, 0), (0, 0), (0, Mp - M)))

    w = weight_oc.T.reshape(C, O, 1).astype(jnp.float32)        # (C, O, 1)
    b = bias_o.reshape(O, 1).astype(jnp.float32)                # (O, 1)

    out_dtype = x_nchw.dtype    # PyTorch Conv2d preserves the input dtype.

    grid = (N, Mp // tm)
    out = pl.pallas_call(
        _conv1x1_kernel,
        out_shape=jax.ShapeDtypeStruct((N, O, Mp), out_dtype),
        grid=grid,
        in_specs=[
            pl.BlockSpec((1, C, tm), lambda n, m: (n, 0, m)),
            pl.BlockSpec((1, C, tm), lambda n, m: (n, 0, m)),
            pl.BlockSpec((C, O, 1), lambda n, m: (0, 0, 0)),
            pl.BlockSpec((O, 1), lambda n, m: (0, 0)),
        ],
        out_specs=pl.BlockSpec((1, O, tm), lambda n, m: (n, 0, m)),
        compiler_params=pltpu.CompilerParams(
            dimension_semantics=("parallel", "parallel")),
    )(x, p, w, b)

    if Mp != M:
        out = out[:, :, :M]
    # (N, O, M) -> (N, O, H, W). Still no transpose.
    return out.reshape(N, O, H, W)


class ModelPallas:
    def __init__(self, key):
        in_ch, out_ch = 2, 8
        kw, kb = jax.random.split(key)
        # Conv2d-default-style init (uniform in +/- 1/sqrt(fan_in)).
        bound = 1.0 / jnp.sqrt(in_ch * 1 * 1)
        self.weight = jax.random.uniform(
            kw, (out_ch, in_ch), jnp.float32, -bound, bound)
        self.bias = jax.random.uniform(kb, (out_ch,), jnp.float32, -bound, bound)

    def __call__(self, x1, padding1=None, *, key=None):
        if padding1 is None:
            # torch.randn(x1.shape) equivalent; deterministic via provided key.
            assert key is not None, "Provide a PRNG key to generate padding1"
            padding1 = jax.random.normal(key, x1.shape, x1.dtype)
        return conv1x1_forward(x1, padding1, self.weight, self.bias)


if __name__ == "__main__":
    root = jax.random.PRNGKey(0)
    k_model, k_x, k_pad = jax.random.split(root, 3)

    # Shapes from the original module spec (in_channels must be 2).
    x1 = jax.random.normal(k_x, (1, 2, 64, 64), jnp.float32)

    model = ModelPallas(k_model)
    out = model(x1, padding1=None, key=k_pad)
    out = jax.block_until_ready(out)

    # Sanity check against a pure-JAX reference of the same computation.
    pad_ref = jax.random.normal(k_pad, x1.shape, x1.dtype)
    xs = x1 + pad_ref
    ref = (
        jnp.einsum("nchw,oc->nohw", xs, model.weight)
        + model.bias.reshape(1, -1, 1, 1)
    )
    assert out.shape == (1, 8, 64, 64)
    assert out.dtype == x1.dtype
    assert jnp.allclose(out, ref, atol=1e-5, rtol=1e-5)

    print("KERNEL_OK")
</pallas_src>

<mosaic_0001>
module attributes {stable_mosaic.version = 11 : i64} {
  func.func @_conv1x1_kernel(%arg0: i32, %arg1: i32, %arg2: memref<1x2x2048xf32, #tpu.memory_space<vmem>>, %arg3: memref<1x2x2048xf32, #tpu.memory_space<vmem>>, %arg4: memref<2x8x1xf32, #tpu.memory_space<vmem>>, %arg5: memref<8x1xf32, #tpu.memory_space<vmem>>, %arg6: memref<1x8x2048xf32, #tpu.memory_space<vmem>>) attributes {dimension_semantics = [#tpu.dimension_semantics<parallel>, #tpu.dimension_semantics<parallel>], iteration_bounds = array<i64: 1, 2>, scalar_prefetch = 0 : i64, scratch_operands = 0 : i64, tpu.core_type = #tpu.core_type<tc>, window_params = [{transform_indices = @transform_0, window_bounds = array<i64: 1, 2, 2048>}, {transform_indices = @transform_1, window_bounds = array<i64: 1, 2, 2048>}, {pipeline_mode = #tpu.pipeline_mode<synchronous>, transform_indices = @transform_2, window_bounds = array<i64: 2, 8, 1>}, {pipeline_mode = #tpu.pipeline_mode<synchronous>, transform_indices = @transform_3, window_bounds = array<i64: 8, 1>}, {transform_indices = @transform_4, window_bounds = array<i64: 1, 8, 2048>}]} {
    %c0 = arith.constant 0 : index
    %c0_0 = arith.constant 0 : index
    %c0_1 = arith.constant 0 : index
    %0 = vector.load %arg2[%c0, %c0_0, %c0_1] : memref<1x2x2048xf32, #tpu.memory_space<vmem>>, vector<1x2x2048xf32>
    %1 = vector.shape_cast %0 : vector<1x2x2048xf32> to vector<2x2048xf32>
    %c0_2 = arith.constant 0 : index
    %c0_3 = arith.constant 0 : index
    %c0_4 = arith.constant 0 : index
    %2 = vector.load %arg3[%c0_2, %c0_3, %c0_4] : memref<1x2x2048xf32, #tpu.memory_space<vmem>>, vector<1x2x2048xf32>
    %3 = vector.shape_cast %2 : vector<1x2x2048xf32> to vector<2x2048xf32>
    %4 = arith.addf %1, %3 : vector<2x2048xf32>
    %c0_5 = arith.constant 0 : index
    %c0_6 = arith.constant 0 : index
    %5 = vector.load %arg5[%c0_5, %c0_6] : memref<8x1xf32, #tpu.memory_space<vmem>>, vector<8x1xf32>
    %6 = vector.shape_cast %5 : vector<8x1xf32> to vector<8x1xf32>
    %7 = vector.broadcast %6 : vector<8x1xf32> to vector<8x2048xf32>
    %c0_7 = arith.constant 0 : index
    %c0_8 = arith.constant 0 : index
    %c0_9 = arith.constant 0 : index
    %8 = vector.load %arg4[%c0_7, %c0_8, %c0_9] : memref<2x8x1xf32, #tpu.memory_space<vmem>>, vector<1x8x1xf32>
    %9 = vector.shape_cast %8 : vector<1x8x1xf32> to vector<8x1xf32>
    %10 = vector.extract_strided_slice %4 {offsets = [0, 0], sizes = [1, 2048], strides = [1, 1]} : vector<2x2048xf32> to vector<1x2048xf32>
    %11 = vector.broadcast %9 : vector<8x1xf32> to vector<8x2048xf32>
    %12 = vector.broadcast %10 : vector<1x2048xf32> to vector<8x2048xf32>
    %13 = arith.mulf %11, %12 : vector<8x2048xf32>
    %14 = arith.addf %7, %13 : vector<8x2048xf32>
    %c1 = arith.constant 1 : index
    %c0_10 = arith.constant 0 : index
    %c0_11 = arith.constant 0 : index
    %15 = vector.load %arg4[%c1, %c0_10, %c0_11] : memref<2x8x1xf32, #tpu.memory_space<vmem>>, vector<1x8x1xf32>
    %16 = vector.shape_cast %15 : vector<1x8x1xf32> to vector<8x1xf32>
    %17 = vector.extract_strided_slice %4 {offsets = [1, 0], sizes = [1, 2048], strides = [1, 1]} : vector<2x2048xf32> to vector<1x2048xf32>
    %18 = vector.broadcast %16 : vector<8x1xf32> to vector<8x2048xf32>
    %19 = vector.broadcast %17 : vector<1x2048xf32> to vector<8x2048xf32>
    %20 = arith.mulf %18, %19 : vector<8x2048xf32>
    %21 = arith.addf %14, %20 : vector<8x2048xf32>
    %c0_12 = arith.constant 0 : index
    %c0_13 = arith.constant 0 : index
    %c0_14 = arith.constant 0 : index
    %22 = vector.load %arg6[%c0_12, %c0_13, %c0_14] : memref<1x8x2048xf32, #tpu.memory_space<vmem>>, vector<1x8x2048xf32>
    %23 = vector.shape_cast %22 : vector<1x8x2048xf32> to vector<8x2048xf32>
    %24 = vector.shape_cast %21 : vector<8x2048xf32> to vector<1x8x2048xf32>
    tpu.vector_store %arg6[%c0_12, %c0_13, %c0_14], %24 {strides = array<i32>} : memref<1x8x2048xf32, #tpu.memory_space<vmem>>, vector<1x8x2048xf32>,
    return
  }
  func.func @transform_0(%arg0: i32, %arg1: i32) -> (i32, i32, i32) {
    %c0_i32 = arith.constant 0 : i32
    %c0_i32_0 = arith.constant 0 : i32
    return %arg0, %c0_i32, %arg1 : i32, i32, i32
  }
  func.func @transform_1(%arg0: i32, %arg1: i32) -> (i32, i32, i32) {
    %c0_i32 = arith.constant 0 : i32
    %c0_i32_0 = arith.constant 0 : i32
    return %arg0, %c0_i32, %arg1 : i32, i32, i32
  }
  func.func @transform_2(%arg0: i32, %arg1: i32) -> (i32, i32, i32) {
    %c0_i32 = arith.constant 0 : i32
    %c0_i32_0 = arith.constant 0 : i32
    %c0_i32_1 = arith.constant 0 : i32
    %c0_i32_2 = arith.constant 0 : i32
    return %c0_i32, %c0_i32_0, %c0_i32_1 : i32, i32, i32
  }
  func.func @transform_3(%arg0: i32, %arg1: i32) -> (i32, i32) {
    %c0_i32 = arith.constant 0 : i32
    %c0_i32_0 = arith.constant 0 : i32
    %c0_i32_1 = arith.constant 0 : i32
    return %c0_i32, %c0_i32_0 : i32, i32
  }
  func.func @transform_4(%arg0: i32, %arg1: i32) -> (i32, i32, i32) {
    %c0_i32 = arith.constant 0 : i32
    %c0_i32_0 = arith.constant 0 : i32
    return %arg0, %c0_i32, %arg1 : i32, i32, i32
  }
}

</mosaic_0001>

<llo_original>
// kernel: tpu_custom_call.1
$region0: #{tpu_custom_call.1}
  #allocation0 [shape = 'u32[]', space=smem, size = 0x4, offset = 0x4, fixed_abs, tag = 'smem constant byte address 0x4 - core index']
  #allocation1 [shape = 'u32[144,128]{1,0:T(1,128)}', space=vmem, size = 0x12000, scoped, tag = 'internal scratch']
  %s0 = inlined_call_operand.hbm [shape: f32[1,2,4096], index: 0, kind: input, shape index: {}]
  %s1 = inlined_call_operand.hbm [shape: f32[1,2,4096], index: 1, kind: input, shape index: {}]
  %s2 = inlined_call_operand.vmem [shape: f32[2,8,1], index: 2, kind: input, shape index: {}]
  %s3 = inlined_call_operand.vmem [shape: f32[8,1], index: 3, kind: input, shape index: {}]
  %s4 = inlined_call_operand.hbm [shape: f32[1,8,4096], index: 4, kind: output, shape index: {}]
  %s5 = sld [smem:[#allocation0]]
  $region57: #{tpu_custom_call.1} parent=0
    _
  %s7 = ssub.s32 1, %s5
  %s8 = scalar_select 0, %s7, %s5
  $region1: #{tpu_custom_call.1} parent=0
    #allocation2 [shape = 'u8[32768]{0}', space=vmem, size = 0x8000, scoped, tag = 'input window, operand 0']
    #allocation3 [shape = 's32[2]{0}', space=sflag, size = 0x8, scoped, tag = 'scoped memory for tpu_custom_call.1']
    #allocation4 [shape = 's32[2]{0}', space=sflag, size = 0x8, scoped, tag = 'scoped memory for tpu_custom_call.1']
    #allocation5 [shape = 'u8[32768]{0}', space=vmem, size = 0x8000, scoped, tag = 'input window, operand 1']
    #allocation6 [shape = 's32[2]{0}', space=sflag, size = 0x8, scoped, tag = 'scoped memory for tpu_custom_call.1']
    #allocation7 [shape = 'u8[131072]{0}', space=vmem, size = 0x20000, scoped, tag = 'output window, operand 0']
    %9 = vsyncpa [#allocation3], 0
    %s10 = scalar_lea.sflag [#allocation3], 1
    %11 = vsyncpa %s10, 0
    %12 = vsyncpa [#allocation6], 0
    %s13 = scalar_lea.sflag [#allocation6], 1
    %14 = vsyncpa %s13, 0
    %15 = vsyncpa [#allocation4], 0
    %s16 = scalar_lea.sflag [#allocation4], 1
    %17 = vsyncpa %s16, 0
    loop: start=0, step=1, limit=4
    $region2: #{tpu_custom_call.1} parent=1 // loop_pre_header
      _
    $region3: #{tpu_custom_call.1} parent=1 // loop_header
      %s19 = sphi 0, %s23
      %p20 = scmp.ge.s32.totalorder %s19, 4
      %s26 = sphi 0, %s38
      %s27 = sphi 0, %s34
      %s28 = sphi 0, %s26
      %s29 = sphi 0, %s27
      %s30 = sphi 0, %s28
      %s31 = sphi 0, %s29
      %s43 = sphi 0, %s45
      %s46 = sphi 0, %s43
      %s47 = sphi 0, %s46
      %s63 = sphi 0, %s47
      %s71 = sphi 0, %s73
      %s74 = sphi 0, %s71
      %s75 = sphi 0, %s74
      %s91 = sphi 0, %s75
      %s95 = sphi 0, %s95
      %s97 = sphi 0, %s95
      %s98 = sphi 0, %s97
      %s112 = sphi 0, %s98
      %s116 = sphi 0, %s116
      %s118 = sphi 0, %s116
      %s119 = sphi 0, %s118
      %s133 = sphi 0, %s119
      %s141 = sphi 0, %s143
      %s144 = sphi 0, %s141
      %s145 = sphi 0, %s144
      %s161 = sphi 0, %s145
    $region4: #{tpu_custom_call.1} parent=1 // loop_header_branch
      %22 = sbr.rel (%p20) target = $region8
    $region5: #{tpu_custom_call.1} parent=1 // loop_body
      %s24 = ssub.s32 %s19, 1
      %s25 = ssub.s32 %s19, 2
      %s32 = sadd.s32 1, %s27
      %p33 = scmp.ge.s32.totalorder %s32, 2
      %s34 = scalar_select %p33, 0, %s32
      %s35 = sadd.s32 1, %s26
      %s36 = scalar_select %p33, %s35, %s26
      %p37 = scmp.ge.s32.totalorder %s36, 1
      %s38 = scalar_select %p37, 0, %s36
      %s39 = ssub.s32 %s26, %s38
      %s40 = ssub.s32 %s27, %s34
      %s41 = sor.u32 %s39, %s40
      %p42 = scmp.eq.s32.totalorder %s41, 0
      %s44 = sadd.s32 %s43, 1
      %s45 = scalar_select %p42, %s43, %s44
      %p48 = pneg %p42
      %p49 = scmp.eq.s32.totalorder %s19, 1
      %p50 = por %p48, %p49
      %p51 = scmp.ne.s32.totalorder %s43, %s46
      %p52 = scmp.eq.s32.totalorder %s19, 0
      %p53 = por %p51, %p52
      %p54 = scmp.ne.s32.totalorder %s43, %s46
      %p55 = scmp.eq.s32.totalorder %s24, 1
      %p56 = por %p54, %p55
      %p57 = scmp.ne.s32.totalorder %s46, %s47
      %p58 = scmp.eq.s32.totalorder %s24, 0
      %p59 = por %p57, %p58
      %p60 = scmp.ne.s32.totalorder %s46, %s47
      %p61 = scmp.eq.s32.totalorder %s25, 1
      %p62 = por %p60, %p61
      %p64 = scmp.ne.s32.totalorder %s47, %s63
      %p65 = scmp.eq.s32.totalorder %s25, 0
      %p66 = por %p64, %p65
      %s67 = ssub.s32 %s26, %s38
      %s68 = ssub.s32 %s27, %s34
      %s69 = sor.u32 %s67, %s68
      %p70 = scmp.eq.s32.totalorder %s69, 0
      %s72 = sadd.s32 %s71, 1
      %s73 = scalar_select %p70, %s71, %s72
      %p76 = pneg %p70
      %p77 = scmp.eq.s32.totalorder %s19, 1
      %p78 = por %p76, %p77
      %p79 = scmp.ne.s32.totalorder %s71, %s74
      %p80 = scmp.eq.s32.totalorder %s19, 0
      %p81 = por %p79, %p80
      %p82 = scmp.ne.s32.totalorder %s71, %s74
      %p83 = scmp.eq.s32.totalorder %s24, 1
      %p84 = por %p82, %p83
      %p85 = scmp.ne.s32.totalorder %s74, %s75
      %p86 = scmp.eq.s32.totalorder %s24, 0
      %p87 = por %p85, %p86
      %p88 = scmp.ne.s32.totalorder %s74, %s75
      %p89 = scmp.eq.s32.totalorder %s25, 1
      %p90 = por %p88, %p89
      %p92 = scmp.ne.s32.totalorder %s75, %s91
      %p93 = scmp.eq.s32.totalorder %s25, 0
      %p94 = por %p92, %p93
      %s96 = sadd.s32 %s95, 1
      %p99 = scmp.eq.s32.totalorder %s19, 1
      %p100 = scmp.ne.s32.totalorder %s95, %s97
      %p101 = scmp.eq.s32.totalorder %s19, 0
      %p102 = por %p100, %p101
      %p103 = scmp.ne.s32.totalorder %s95, %s97
      %p104 = scmp.eq.s32.totalorder %s24, 1
      %p105 = por %p103, %p104
      %p106 = scmp.ne.s32.totalorder %s97, %s98
      %p107 = scmp.eq.s32.totalorder %s24, 0
      %p108 = por %p106, %p107
      %p109 = scmp.ne.s32.totalorder %s97, %s98
      %p110 = scmp.eq.s32.totalorder %s25, 1
      %p111 = por %p109, %p110
      %p113 = scmp.ne.s32.totalorder %s98, %s112
      %p114 = scmp.eq.s32.totalorder %s25, 0
      %p115 = por %p113, %p114
      %s117 = sadd.s32 %s116, 1
      %p120 = scmp.eq.s32.totalorder %s19, 1
      %p121 = scmp.ne.s32.totalorder %s116, %s118
      %p122 = scmp.eq.s32.totalorder %s19, 0
      %p123 = por %p121, %p122
      %p124 = scmp.ne.s32.totalorder %s116, %s118
      %p125 = scmp.eq.s32.totalorder %s24, 1
      %p126 = por %p124, %p125
      %p127 = scmp.ne.s32.totalorder %s118, %s119
      %p128 = scmp.eq.s32.totalorder %s24, 0
      %p129 = por %p127, %p128
      %p130 = scmp.ne.s32.totalorder %s118, %s119
      %p131 = scmp.eq.s32.totalorder %s25, 1
      %p132 = por %p130, %p131
      %p134 = scmp.ne.s32.totalorder %s119, %s133
      %p135 = scmp.eq.s32.totalorder %s25, 0
      %p136 = por %p134, %p135
      %s137 = ssub.s32 %s26, %s38
      %s138 = ssub.s32 %s27, %s34
      %s139 = sor.u32 %s137, %s138
      %p140 = scmp.eq.s32.totalorder %s139, 0
      %s142 = sadd.s32 %s141, 1
      %s143 = scalar_select %p140, %s141, %s142
      %p146 = pneg %p140
      %p147 = scmp.eq.s32.totalorder %s19, 1
      %p148 = por %p146, %p147
      %p149 = scmp.ne.s32.totalorder %s141, %s144
      %p150 = scmp.eq.s32.totalorder %s19, 0
      %p151 = por %p149, %p150
      %p152 = scmp.ne.s32.totalorder %s141, %s144
      %p153 = scmp.eq.s32.totalorder %s24, 1
      %p154 = por %p152, %p153
      %p155 = scmp.ne.s32.totalorder %s144, %s145
      %p156 = scmp.eq.s32.totalorder %s24, 0
      %p157 = por %p155, %p156
      %p158 = scmp.ne.s32.totalorder %s144, %s145
      %p159 = scmp.eq.s32.totalorder %s25, 1
      %p160 = por %p158, %p159
      %p162 = scmp.ne.s32.totalorder %s145, %s161
      %p163 = scmp.eq.s32.totalorder %s25, 0
      %p164 = por %p162, %p163
      %p165 = scmp.le.s32.totalorder 1, %s19
      %p166 = scmp.lt.s32.totalorder %s19, 3
      %p167 = pnand %p165, %p166
      %p168 = pneg %p167
      // Predicated region
      $region9: #{tpu_custom_call.1} parent=5 // pred_check
        _
      $region10: #{tpu_custom_call.1} parent=5 // pred_check_branch
        %170 = sbr.rel (%p167) target = $region12
      $region11: #{tpu_custom_call.1} parent=5 // pred_region
        %s171 = ssub.s32 %s19, 1
        // Predicated region
        $region13: #{tpu_custom_call.1} parent=11 // pred_check
          %p172 = pneg %p108
        $region14: #{tpu_custom_call.1} parent=11 // pred_check_branch
          %174 = sbr.rel (%p172) target = $region16
        $region15: #{tpu_custom_call.1} parent=11 // pred_region
          _
        $region16: #{tpu_custom_call.1} parent=11 // pred_fallthru
          _
        // Predicated region
        $region17: #{tpu_custom_call.1} parent=11 // pred_check
          %p175 = pneg %p129
        $region18: #{tpu_custom_call.1} parent=11 // pred_check_branch
          %177 = sbr.rel (%p175) target = $region20
        $region19: #{tpu_custom_call.1} parent=11 // pred_region
          _
        $region20: #{tpu_custom_call.1} parent=11 // pred_fallthru
          _
      $region12: #{tpu_custom_call.1} parent=5 // pred_fallthru
        _
      %p178 = scmp.lt.s32.totalorder %s19, 2
      // Predicated region
      $region21: #{tpu_custom_call.1} parent=5 // pred_check
        %p179 = pneg %p178
      $region22: #{tpu_custom_call.1} parent=5 // pred_check_branch
        %181 = sbr.rel (%p179) target = $region24
      $region23: #{tpu_custom_call.1} parent=5 // pred_region
        // Predicated region
        $region25: #{tpu_custom_call.1} parent=23 // pred_check
          %p182 = pneg %p53
        $region26: #{tpu_custom_call.1} parent=23 // pred_check_branch
          %184 = sbr.rel (%p182) target = $region28
        $region27: #{tpu_custom_call.1} parent=23 // pred_region
          %s185 = sand.u32 %s43, 1
          %s186 = scalar_lea.sflag [#allocation3], %s185
          %s187 = sand.u32 %s43, 1
          %s188 = smul.addr %s187, 32
          %s189 = scalar_lea.vmem [#allocation2], %s188
          %s190 = smul.u32 16, %s27
          %s192 = ssub.s32 512, 512
          %193 = vsyncadd %s186, %s192
          %s194 = smul.addr %s26, 32
          %s195 = sadd.s32 %s190, %s194
          %s196 = smul.addr %s195, 32
          %s197 = scalar_lea.hbm %s0, %s196
          %s199 = sshll.u32 %s189, 4
          %s200 = int_to_ptr.vmem [resolvable:$true] %s199
          %202 = dma.hbm_to_vmem [thread:$0]  %s197, 512, %s200, %s186
        $region28: #{tpu_custom_call.1} parent=23 // pred_fallthru
          _
        // Predicated region
        $region29: #{tpu_custom_call.1} parent=23 // pred_check
          %p203 = pneg %p81
        $region30: #{tpu_custom_call.1} parent=23 // pred_check_branch
          %205 = sbr.rel (%p203) target = $region32
        $region31: #{tpu_custom_call.1} parent=23 // pred_region
          %s206 = sand.u32 %s71, 1
          %s207 = scalar_lea.sflag [#allocation6], %s206
          %s208 = sand.u32 %s71, 1
          %s209 = smul.addr %s208, 32
          %s210 = scalar_lea.vmem [#allocation5], %s209
          %s211 = smul.u32 16, %s27
          %s213 = ssub.s32 512, 512
          %214 = vsyncadd %s207, %s213
          %s215 = smul.addr %s26, 32
          %s216 = sadd.s32 %s211, %s215
          %s217 = smul.addr %s216, 32
          %s218 = scalar_lea.hbm %s1, %s217
          %s220 = sshll.u32 %s210, 4
          %s221 = int_to_ptr.vmem [resolvable:$true] %s220
          %223 = dma.hbm_to_vmem [thread:$0]  %s218, 512, %s221, %s207
        $region32: #{tpu_custom_call.1} parent=23 // pred_fallthru
          _
      $region24: #{tpu_custom_call.1} parent=5 // pred_fallthru
        _
      %p224 = scmp.le.s32.totalorder 1, %s19
      %p225 = scmp.lt.s32.totalorder %s19, 3
      %p226 = pnand %p224, %p225
      %p227 = pneg %p226
      // Predicated region
      $region33: #{tpu_custom_call.1} parent=5 // pred_check
        _
      $region34: #{tpu_custom_call.1} parent=5 // pred_check_branch
        %229 = sbr.rel (%p226) target = $region36
      $region35: #{tpu_custom_call.1} parent=5 // pred_region
        %s230 = ssub.s32 %s19, 1
        %s231 = sand.u32 %s46, 1
        %s232 = scalar_lea.sflag [#allocation3], %s231
        %s233 = sand.u32 %s46, 1
        %s234 = smul.addr %s233, 32
        %s235 = scalar_lea.vmem [#allocation2], %s234
        // Predicated region
        $region37: #{tpu_custom_call.1} parent=35 // pred_check
          %p236 = pneg %p59
        $region38: #{tpu_custom_call.1} parent=35 // pred_check_branch
          %238 = sbr.rel (%p236) target = $region40
        $region39: #{tpu_custom_call.1} parent=35 // pred_region
          %239 = dma.done %s232, 512
        $region40: #{tpu_custom_call.1} parent=35 // pred_fallthru
          _
        %s240 = sand.u32 %s74, 1
        %s241 = scalar_lea.sflag [#allocation6], %s240
        %s242 = sand.u32 %s74, 1
        %s243 = smul.addr %s242, 32
        %s244 = scalar_lea.vmem [#allocation5], %s243
        // Predicated region
        $region41: #{tpu_custom_call.1} parent=35 // pred_check
          %p245 = pneg %p87
        $region42: #{tpu_custom_call.1} parent=35 // pred_check_branch
          %247 = sbr.rel (%p245) target = $region44
        $region43: #{tpu_custom_call.1} parent=35 // pred_region
          %248 = dma.done %s241, 512
        $region44: #{tpu_custom_call.1} parent=35 // pred_fallthru
          _
        %s249 = sand.u32 %s46, 1
        %s250 = scalar_lea.sflag [#allocation3], %s249
        %s251 = sand.u32 %s46, 1
        %s252 = smul.addr %s251, 32
        %s253 = scalar_lea.vmem [#allocation2], %s252
        %p254 = pneg %p59
        %p255 = pneg %p56
        %s256 = sand.u32 %s74, 1
        %s257 = scalar_lea.sflag [#allocation6], %s256
        %s258 = sand.u32 %s74, 1
        %s259 = smul.addr %s258, 32
        %s260 = scalar_lea.vmem [#allocation5], %s259
        %p261 = pneg %p87
        %p262 = pneg %p84
        %p263 = pneg %p108
        %p264 = pneg %p105
        %p265 = pneg %p129
        %p266 = pneg %p126
        %p267 = pneg %p157
        %p268 = pneg %p154
        %s269 = sand.u32 %s144, 1
        %s270 = scalar_lea.sflag [#allocation4], %s269
        %s271 = sand.u32 %s144, 1
        %s272 = smul.addr %s271, 128
        %s273 = scalar_lea.vmem [#allocation7], %s272
        %s274 = smul.u32 16, %s29
        %s275 = smul.u32 16, %s29
        %s276 = smul.u32 16, %s29
        %v277 = vld [vmem:[%s235] sm:$0xff]
        %v278 = vld [vmem:[%s235 + $0x8] sm:$0xff]
        %v279 = vld [vmem:[%s235 + $0x10] sm:$0xff]
        %v280 = vld [vmem:[%s235 + $0x18] sm:$0xff]
        %v281 = vld [vmem:[%s244] sm:$0xff]
        %v282 = vld [vmem:[%s244 + $0x8] sm:$0xff]
        %v283 = vld [vmem:[%s244 + $0x10] sm:$0xff]
        %v284 = vld [vmem:[%s244 + $0x18] sm:$0xff]
        %v285 = vadd.f32 %v277, %v281
        %v286 = vadd.f32 %v278, %v282
        %v287 = vadd.f32 %v279, %v283
        %v288 = vadd.f32 %v280, %v284
        %v289 = vld [vmem:[%s3] sm:$0xff]
        %291 = vset.pattern.permute.xlu0 0
        %292 = vperm.xlu0 %291, %v289
        %v293 = vpop.permute.xlu0 %292
        %v295 = vld [vmem:[%s2] sm:$0xff]
        %297 = vset.pattern.permute.xlu0 0
        %298 = vperm.xlu0 %297, %v295
        %v299 = vpop.permute.xlu0 %298
        %v305 = vlaneseq
        %v306 = vshrl.u32 %v305, 7
        %v307 = vsub.s32 0, %v306
        %v308 = vrot.slane %v285, %v307
        %v309 = vlaneseq
        %v310 = vshrl.u32 %v309, 7
        %v311 = vsub.s32 2, %v310
        %v312 = vrot.slane %v285, %v311
        %v313 = vlaneseq
        %v314 = vshrl.u32 %v313, 7
        %v315 = vsub.s32 4, %v314
        %v316 = vrot.slane %v285, %v315
        %v317 = vlaneseq
        %v318 = vshrl.u32 %v317, 7
        %v319 = vsub.s32 6, %v318
        %v320 = vrot.slane %v285, %v319
        %v321 = vlaneseq
        %v322 = vshrl.u32 %v321, 7
        %v323 = vsub.s32 0, %v322
        %v324 = vrot.slane %v286, %v323
        %v325 = vlaneseq
        %v326 = vshrl.u32 %v325, 7
        %v327 = vsub.s32 2, %v326
        %v328 = vrot.slane %v286, %v327
        %v329 = vlaneseq
        %v330 = vshrl.u32 %v329, 7
        %v331 = vsub.s32 4, %v330
        %v332 = vrot.slane %v286, %v331
        %v333 = vlaneseq
        %v334 = vshrl.u32 %v333, 7
        %v335 = vsub.s32 6, %v334
        %v336 = vrot.slane %v286, %v335
        %v337 = vlaneseq
        %v338 = vshrl.u32 %v337, 7
        %v339 = vsub.s32 0, %v338
        %v340 = vrot.slane %v287, %v339
        %v341 = vlaneseq
        %v342 = vshrl.u32 %v341, 7
        %v343 = vsub.s32 2, %v342
        %v344 = vrot.slane %v287, %v343
        %v345 = vlaneseq
        %v346 = vshrl.u32 %v345, 7
        %v347 = vsub.s32 4, %v346
        %v348 = vrot.slane %v287, %v347
        %v349 = vlaneseq
        %v350 = vshrl.u32 %v349, 7
        %v351 = vsub.s32 6, %v350
        %v352 = vrot.slane %v287, %v351
        %v353 = vlaneseq
        %v354 = vshrl.u32 %v353, 7
        %v355 = vsub.s32 0, %v354
        %v356 = vrot.slane %v288, %v355
        %v357 = vlaneseq
        %v358 = vshrl.u32 %v357, 7
        %v359 = vsub.s32 2, %v358
        %v360 = vrot.slane %v288, %v359
        %v361 = vlaneseq
        %v362 = vshrl.u32 %v361, 7
        %v363 = vsub.s32 4, %v362
        %v364 = vrot.slane %v288, %v363
        %v365 = vlaneseq
        %v366 = vshrl.u32 %v365, 7
        %v367 = vsub.s32 6, %v366
        %v368 = vrot.slane %v288, %v367
        %v385 = vlaneseq
        %v386 = vshrl.u32 %v385, 7
        %v387 = vsub.s32 0, %v386
        %v388 = vrot.slane %v308, %v387
        %v389 = vlaneseq
        %v390 = vshrl.u32 %v389, 7
        %v391 = vsub.s32 0, %v390
        %v392 = vrot.slane %v312, %v391
        %v393 = vlaneseq
        %v394 = vshrl.u32 %v393, 7
        %v395 = vsub.s32 0, %v394
        %v396 = vrot.slane %v316, %v395
        %v397 = vlaneseq
        %v398 = vshrl.u32 %v397, 7
        %v399 = vsub.s32 0, %v398
        %v400 = vrot.slane %v320, %v399
        %v401 = vlaneseq
        %v402 = vshrl.u32 %v401, 7
        %v403 = vsub.s32 0, %v402
        %v404 = vrot.slane %v324, %v403
        %v405 = vlaneseq
        %v406 = vshrl.u32 %v405, 7
        %v407 = vsub.s32 0, %v406
        %v408 = vrot.slane %v328, %v407
        %v409 = vlaneseq
        %v410 = vshrl.u32 %v409, 7
        %v411 = vsub.s32 0, %v410
        %v412 = vrot.slane %v332, %v411
        %v413 = vlaneseq
        %v414 = vshrl.u32 %v413, 7
        %v415 = vsub.s32 0, %v414
        %v416 = vrot.slane %v336, %v415
        %v417 = vlaneseq
        %v418 = vshrl.u32 %v417, 7
        %v419 = vsub.s32 0, %v418
        %v420 = vrot.slane %v340, %v419
        %v421 = vlaneseq
        %v422 = vshrl.u32 %v421, 7
        %v423 = vsub.s32 0, %v422
        %v424 = vrot.slane %v344, %v423
        %v425 = vlaneseq
        %v426 = vshrl.u32 %v425, 7
        %v427 = vsub.s32 0, %v426
        %v428 = vrot.slane %v348, %v427
        %v429 = vlaneseq
        %v430 = vshrl.u32 %v429, 7
        %v431 = vsub.s32 0, %v430
        %v432 = vrot.slane %v352, %v431
        %v433 = vlaneseq
        %v434 = vshrl.u32 %v433, 7
        %v435 = vsub.s32 0, %v434
        %v436 = vrot.slane %v356, %v435
        %v437 = vlaneseq
        %v438 = vshrl.u32 %v437, 7
        %v439 = vsub.s32 0, %v438
        %v440 = vrot.slane %v360, %v439
        %v441 = vlaneseq
        %v442 = vshrl.u32 %v441, 7
        %v443 = vsub.s32 0, %v442
        %v444 = vrot.slane %v364, %v443
        %v445 = vlaneseq
        %v446 = vshrl.u32 %v445, 7
        %v447 = vsub.s32 0, %v446
        %v448 = vrot.slane %v368, %v447
        %v449 = vmul.f32 %v299, %v388
        %v450 = vmul.f32 %v299, %v392
        %v451 = vmul.f32 %v299, %v396
        %v452 = vmul.f32 %v299, %v400
        %v453 = vmul.f32 %v299, %v404
        %v454 = vmul.f32 %v299, %v408
        %v455 = vmul.f32 %v299, %v412
        %v456 = vmul.f32 %v299, %v416
        %v457 = vmul.f32 %v299, %v420
        %v458 = vmul.f32 %v299, %v424
        %v459 = vmul.f32 %v299, %v428
        %v460 = vmul.f32 %v299, %v432
        %v461 = vmul.f32 %v299, %v436
        %v462 = vmul.f32 %v299, %v440
        %v463 = vmul.f32 %v299, %v444
        %v464 = vmul.f32 %v299, %v448
        %v465 = vadd.f32 %v293, %v449
        %v466 = vadd.f32 %v293, %v450
        %v467 = vadd.f32 %v293, %v451
        %v468 = vadd.f32 %v293, %v452
        %v469 = vadd.f32 %v293, %v453
        %v470 = vadd.f32 %v293, %v454
        %v471 = vadd.f32 %v293, %v455
        %v472 = vadd.f32 %v293, %v456
        %v473 = vadd.f32 %v293, %v457
        %v474 = vadd.f32 %v293, %v458
        %v475 = vadd.f32 %v293, %v459
        %v476 = vadd.f32 %v293, %v460
        %v477 = vadd.f32 %v293, %v461
        %v478 = vadd.f32 %v293, %v462
        %v479 = vadd.f32 %v293, %v463
        %v480 = vadd.f32 %v293, %v464
        %s481 = scalar_lea.vmem %s2, 8
        %v482 = vld [vmem:[%s481] sm:$0xff]
        %484 = vset.pattern.permute.xlu0 0
        %485 = vperm.xlu0 %484, %v482
        %v486 = vpop.permute.xlu0 %485
        %v488 = vlaneseq
        %v489 = vshrl.u32 %v488, 7
        %v490 = vsub.s32 1, %v489
        %v491 = vrot.slane %v285, %v490
        %v492 = vlaneseq
        %v493 = vshrl.u32 %v492, 7
        %v494 = vsub.s32 3, %v493
        %v495 = vrot.slane %v285, %v494
        %v496 = vlaneseq
        %v497 = vshrl.u32 %v496, 7
        %v498 = vsub.s32 5, %v497
        %v499 = vrot.slane %v285, %v498
        %v500 = vlaneseq
        %v501 = vshrl.u32 %v500, 7
        %v502 = vsub.s32 7, %v501
        %v503 = vrot.slane %v285, %v502
        %v504 = vlaneseq
        %v505 = vshrl.u32 %v504, 7
        %v506 = vsub.s32 1, %v505
        %v507 = vrot.slane %v286, %v506
        %v508 = vlaneseq
        %v509 = vshrl.u32 %v508, 7
        %v510 = vsub.s32 3, %v509
        %v511 = vrot.slane %v286, %v510
        %v512 = vlaneseq
        %v513 = vshrl.u32 %v512, 7
        %v514 = vsub.s32 5, %v513
        %v515 = vrot.slane %v286, %v514
        %v516 = vlaneseq
        %v517 = vshrl.u32 %v516, 7
        %v518 = vsub.s32 7, %v517
        %v519 = vrot.slane %v286, %v518
        %v520 = vlaneseq
        %v521 = vshrl.u32 %v520, 7
        %v522 = vsub.s32 1, %v521
        %v523 = vrot.slane %v287, %v522
        %v524 = vlaneseq
        %v525 = vshrl.u32 %v524, 7
        %v526 = vsub.s32 3, %v525
        %v527 = vrot.slane %v287, %v526
        %v528 = vlaneseq
        %v529 = vshrl.u32 %v528, 7
        %v530 = vsub.s32 5, %v529
        %v531 = vrot.slane %v287, %v530
        %v532 = vlaneseq
        %v533 = vshrl.u32 %v532, 7
        %v534 = vsub.s32 7, %v533
        %v535 = vrot.slane %v287, %v534
        %v536 = vlaneseq
        %v537 = vshrl.u32 %v536, 7
        %v538 = vsub.s32 1, %v537
        %v539 = vrot.slane %v288, %v538
        %v540 = vlaneseq
        %v541 = vshrl.u32 %v540, 7
        %v542 = vsub.s32 3, %v541
        %v543 = vrot.slane %v288, %v542
        %v544 = vlaneseq
        %v545 = vshrl.u32 %v544, 7
        %v546 = vsub.s32 5, %v545
        %v547 = vrot.slane %v288, %v546
        %v548 = vlaneseq
        %v549 = vshrl.u32 %v548, 7
        %v550 = vsub.s32 7, %v549
        %v551 = vrot.slane %v288, %v550
        %v568 = vlaneseq
        %v569 = vshrl.u32 %v568, 7
        %v570 = vsub.s32 1, %v569
        %v571 = vrot.slane %v491, %v570
        %v572 = vlaneseq
        %v573 = vshrl.u32 %v572, 7
        %v574 = vsub.s32 1, %v573
        %v575 = vrot.slane %v495, %v574
        %v576 = vlaneseq
        %v577 = vshrl.u32 %v576, 7
        %v578 = vsub.s32 1, %v577
        %v579 = vrot.slane %v499, %v578
        %v580 = vlaneseq
        %v581 = vshrl.u32 %v580, 7
        %v582 = vsub.s32 1, %v581
        %v583 = vrot.slane %v503, %v582
        %v584 = vlaneseq
        %v585 = vshrl.u32 %v584, 7
        %v586 = vsub.s32 1, %v585
        %v587 = vrot.slane %v507, %v586
        %v588 = vlaneseq
        %v589 = vshrl.u32 %v588, 7
        %v590 = vsub.s32 1, %v589
        %v591 = vrot.slane %v511, %v590
        %v592 = vlaneseq
        %v593 = vshrl.u32 %v592, 7
        %v594 = vsub.s32 1, %v593
        %v595 = vrot.slane %v515, %v594
        %v596 = vlaneseq
        %v597 = vshrl.u32 %v596, 7
        %v598 = vsub.s32 1, %v597
        %v599 = vrot.slane %v519, %v598
        %v600 = vlaneseq
        %v601 = vshrl.u32 %v600, 7
        %v602 = vsub.s32 1, %v601
        %v603 = vrot.slane %v523, %v602
        %v604 = vlaneseq
        %v605 = vshrl.u32 %v604, 7
        %v606 = vsub.s32 1, %v605
        %v607 = vrot.slane %v527, %v606
        %v608 = vlaneseq
        %v609 = vshrl.u32 %v608, 7
        %v610 = vsub.s32 1, %v609
        %v611 = vrot.slane %v531, %v610
        %v612 = vlaneseq
        %v613 = vshrl.u32 %v612, 7
        %v614 = vsub.s32 1, %v613
        %v615 = vrot.slane %v535, %v614
        %v616 = vlaneseq
        %v617 = vshrl.u32 %v616, 7
        %v618 = vsub.s32 1, %v617
        %v619 = vrot.slane %v539, %v618
        %v620 = vlaneseq
        %v621 = vshrl.u32 %v620, 7
        %v622 = vsub.s32 1, %v621
        %v623 = vrot.slane %v543, %v622
        %v624 = vlaneseq
        %v625 = vshrl.u32 %v624, 7
        %v626 = vsub.s32 1, %v625
        %v627 = vrot.slane %v547, %v626
        %v628 = vlaneseq
        %v629 = vshrl.u32 %v628, 7
        %v630 = vsub.s32 1, %v629
        %v631 = vrot.slane %v551, %v630
        %v632 = vmul.f32 %v486, %v571
        %v633 = vmul.f32 %v486, %v575
        %v634 = vmul.f32 %v486, %v579
        %v635 = vmul.f32 %v486, %v583
        %v636 = vmul.f32 %v486, %v587
        %v637 = vmul.f32 %v486, %v591
        %v638 = vmul.f32 %v486, %v595
        %v639 = vmul.f32 %v486, %v599
        %v640 = vmul.f32 %v486, %v603
        %v641 = vmul.f32 %v486, %v607
        %v642 = vmul.f32 %v486, %v611
        %v643 = vmul.f32 %v486, %v615
        %v644 = vmul.f32 %v486, %v619
        %v645 = vmul.f32 %v486, %v623
        %v646 = vmul.f32 %v486, %v627
        %v647 = vmul.f32 %v486, %v631
        %v648 = vadd.f32 %v465, %v632
        %v649 = vadd.f32 %v466, %v633
        %v650 = vadd.f32 %v467, %v634
        %v651 = vadd.f32 %v468, %v635
        %v652 = vadd.f32 %v469, %v636
        %v653 = vadd.f32 %v470, %v637
        %v654 = vadd.f32 %v471, %v638
        %v655 = vadd.f32 %v472, %v639
        %v656 = vadd.f32 %v473, %v640
        %v657 = vadd.f32 %v474, %v641
        %v658 = vadd.f32 %v475, %v642
        %v659 = vadd.f32 %v476, %v643
        %v660 = vadd.f32 %v477, %v644
        %v661 = vadd.f32 %v478, %v645
        %v662 = vadd.f32 %v479, %v646
        %v663 = vadd.f32 %v480, %v647
        %664 = vst [vmem:[%s273] sm:$0xff] %v648
        %665 = vst [vmem:[%s273 + $0x8] sm:$0xff] %v649
        %666 = vst [vmem:[%s273 + $0x10] sm:$0xff] %v650
        %667 = vst [vmem:[%s273 + $0x18] sm:$0xff] %v651
        %668 = vst [vmem:[%s273 + $0x20] sm:$0xff] %v652
        %669 = vst [vmem:[%s273 + $0x28] sm:$0xff] %v653
        %670 = vst [vmem:[%s273 + $0x30] sm:$0xff] %v654
        %671 = vst [vmem:[%s273 + $0x38] sm:$0xff] %v655
        %672 = vst [vmem:[%s273 + $0x40] sm:$0xff] %v656
        %673 = vst [vmem:[%s273 + $0x48] sm:$0xff] %v657
        %674 = vst [vmem:[%s273 + $0x50] sm:$0xff] %v658
        %675 = vst [vmem:[%s273 + $0x58] sm:$0xff] %v659
        %676 = vst [vmem:[%s273 + $0x60] sm:$0xff] %v660
        %677 = vst [vmem:[%s273 + $0x68] sm:$0xff] %v661
        %678 = vst [vmem:[%s273 + $0x70] sm:$0xff] %v662
        %679 = vst [vmem:[%s273 + $0x78] sm:$0xff] %v663
        %s680 = sand.u32 %s144, 1
        %s681 = scalar_lea.sflag [#allocation4], %s680
        %s682 = sand.u32 %s144, 1
        %s683 = smul.addr %s682, 128
        %s684 = scalar_lea.vmem [#allocation7], %s683
        // Predicated region
        $region45: #{tpu_custom_call.1} parent=35 // pred_check
          %p685 = pneg %p154
        $region46: #{tpu_custom_call.1} parent=35 // pred_check_branch
          %687 = sbr.rel (%p685) target = $region48
        $region47: #{tpu_custom_call.1} parent=35 // pred_region
          %s688 = smul.u32 16, %s29
          %s690 = ssub.s32 2048, 2048
          %691 = vsyncadd %s681, %s690
          %s692 = smul.addr %s28, 32
          %s693 = sadd.s32 %s688, %s692
          %s694 = smul.addr %s693, 128
          %s695 = scalar_lea.hbm %s4, %s694
          %s697 = sshll.u32 %s684, 4
          %s698 = int_to_ptr.vmem [resolvable:$true] %s697
          %700 = dma.vmem_to_hbm [thread:$0]  %s698, 2048, %s695, %s681
        $region48: #{tpu_custom_call.1} parent=35 // pred_fallthru
          _
      $region36: #{tpu_custom_call.1} parent=5 // pred_fallthru
        _
      %p701 = scmp.le.s32.totalorder 2, %s19
      // Predicated region
      $region49: #{tpu_custom_call.1} parent=5 // pred_check
        %p702 = pneg %p701
      $region50: #{tpu_custom_call.1} parent=5 // pred_check_branch
        %704 = sbr.rel (%p702) target = $region52
      $region51: #{tpu_custom_call.1} parent=5 // pred_region
        %s705 = ssub.s32 %s19, 2
        // Predicated region
        $region53: #{tpu_custom_call.1} parent=51 // pred_check
          %p706 = pneg %p160
        $region54: #{tpu_custom_call.1} parent=51 // pred_check_branch
          %708 = sbr.rel (%p706) target = $region56
        $region55: #{tpu_custom_call.1} parent=51 // pred_region
          %s709 = sand.u32 %s145, 1
          %s710 = scalar_lea.sflag [#allocation4], %s709
          %s711 = sand.u32 %s145, 1
          %s712 = smul.addr %s711, 128
          %s713 = scalar_lea.vmem [#allocation7], %s712
          %714 = dma.done %s710, 2048
        $region56: #{tpu_custom_call.1} parent=51 // pred_fallthru
          _
      $region52: #{tpu_custom_call.1} parent=5 // pred_fallthru
        _
    $region6: #{tpu_custom_call.1} parent=1 // loop_footer
      %s23 = sadd.s32 1, %s19
    $region7: #{tpu_custom_call.1} parent=1 // loop_footer_branch
      %18 = sbr.rel target = $region3
    $region8: #{tpu_custom_call.1} parent=1 // loop_exit
      _
    %715 = vsyncpa [#allocation3], 1
    %s716 = scalar_lea.sflag [#allocation3], 1
    %717 = vsyncpa %s716, 1
    %718 = vsyncpa [#allocation6], 1
    %s719 = scalar_lea.sflag [#allocation6], 1
    %720 = vsyncpa %s719, 1
    %721 = vsyncpa [#allocation4], 1
    %s722 = scalar_lea.sflag [#allocation4], 1
    %723 = vsyncpa %s722, 1

</llo_original>
